<compile_context>
chip_gen: v6e
topology: v6e:2x2x1
jax: 0.10.0
libtpu: 0.0.40
codegen_flags: <defaults>
</compile_context>

<pallas_src>
import functools

import jax
import jax.numpy as jnp
from jax.experimental import pallas as pl
from jax.experimental.pallas import tpu as pltpu


def _cdiv(a, b):
    return (a + b - 1) // b


def _round_up(x, m):
    return _cdiv(x, m) * m


def _stable_log_softmax_parts(logit):
    m = jnp.max(logit, axis=-1, keepdims=True)
    shifted = logit - m
    lse = jnp.log(jnp.sum(jnp.exp(shifted), axis=-1, keepdims=True))
    return shifted, lse


def _row_valid_mask(ts, seq_len):
    base = pl.program_id(0) * ts
    rows = jax.lax.broadcasted_iota(jnp.int32, (ts, 1), 0)
    return (base + rows) < seq_len


def _ceb_fast_kernel(ids_ref, logit_ref, out_ref, w_row_ref, loss_ref, *,
                     n_members, boost, seq_len, row_mask):
    """Int labels, label_smoothing == 0: only the label column ever matters."""
    e = pl.program_id(1)
    ts, vocab = logit_ref.shape[1], logit_ref.shape[2]

    logit = logit_ref[0].astype(jnp.float32)                    # (ts, V)
    if row_mask:
        valid = _row_valid_mask(ts, seq_len)                    # (ts, 1)
        logit = jnp.where(valid, logit, 0.0)                    # keep math finite

    shifted, lse = _stable_log_softmax_parts(logit)
    ids = ids_ref[...]                                          # (ts, 1) int32
    col = jax.lax.broadcasted_iota(jnp.int32, (ts, vocab), 1)
    picked = jnp.sum(jnp.where(col == ids, shifted, 0.0),
                     axis=-1, keepdims=True)                    # shifted[row, label]
    ent = lse - picked                                          # -log_softmax@label
    if row_mask:
        ent = jnp.where(valid, ent, 0.0)                        # ragged rows -> 0

    @pl.when(e == 0)
    def _first():
        loss_ref[...] = ent                                     # weights implicitly 1
        if n_members > 1:
            w_row_ref[...] = ent * (1.0 - boost) + boost

    if n_members > 1:
        @pl.when(e > 0)
        def _rest():
            contrib = w_row_ref[...] * ent
            loss_ref[...] += contrib

            @pl.when(e < n_members - 1)                         # last write never read
            def _update():
                w_row_ref[...] = contrib * (1.0 - boost) + boost

    @pl.when(e == n_members - 1)
    def _finalize():
        total = jnp.sum(loss_ref[...])
        out_ref[...] = jnp.zeros((1, 8, 128), jnp.float32) + total


def _ceb_dense_kernel(labels_ref, logit_ref, out_ref, w_ref, lab_ref, loss_ref, *,
                      n_members, boost, smoothing, int_labels, seq_len, row_mask):
    """Dense path: float label distributions, or int labels with smoothing."""
    e = pl.program_id(1)
    ts, vocab = logit_ref.shape[1], logit_ref.shape[2]

    logit = logit_ref[0].astype(jnp.float32)                    # (ts, V)
    if row_mask:
        valid = _row_valid_mask(ts, seq_len)
        logit = jnp.where(valid, logit, 0.0)                    # keep math finite

    shifted, lse = _stable_log_softmax_parts(logit)
    log_sm = shifted - lse

    @pl.when(e == 0)
    def _first():
        if int_labels:
            ids = labels_ref[...]                               # (ts, 1) int32
            col = jax.lax.broadcasted_iota(jnp.int32, (ts, vocab), 1)
            on = 1.0 - smoothing + smoothing / vocab
            off = smoothing / vocab
            lab = jnp.where(col == ids, on, off)
        else:
            lab = labels_ref[...].astype(jnp.float32)           # native dtype wire
            lab = (1.0 - smoothing) * lab + smoothing / vocab   # in-kernel smoothing
        if row_mask:
            lab = jnp.where(valid, lab, 0.0)                    # ragged rows -> 0
        if n_members > 1:
            lab_ref[...] = lab                                  # hoisted label cache
        w_ent = -lab * log_sm                                   # weights implicitly 1
        loss_ref[...] = jnp.sum(w_ent, axis=-1, keepdims=True)
        if n_members > 1:
            w_ref[...] = w_ent * (1.0 - boost) + boost

    if n_members > 1:
        @pl.when(e > 0)
        def _rest():
            w_ent = w_ref[...] * (-lab_ref[...] * log_sm)
            loss_ref[...] += jnp.sum(w_ent, axis=-1, keepdims=True)

            @pl.when(e < n_members - 1)                         # last write never read
            def _update():
                w_ref[...] = w_ent * (1.0 - boost) + boost

    @pl.when(e == n_members - 1)
    def _finalize():
        total = jnp.sum(loss_ref[...])
        out_ref[...] = jnp.zeros((1, 8, 128), jnp.float32) + total


def _pick_seq_tile(S, per_row_bytes, budget_bytes, want_multi_tile=False):
    """Largest S tile (multiple of 8, or == S) that fits the VMEM budget.

    want_multi_tile keeps >=2 roughly-balanced tiles so the 'parallel' S axis
    can shard across both TensorCores on v7x.
    """
    cap = max(8, (int(budget_bytes // max(per_row_bytes, 1)) // 8) * 8)
    if want_multi_tile and S > 8:
        cap = min(cap, max(8, _round_up(_cdiv(S, 2), 8)))
    if cap >= S:
        return S
    n = _cdiv(S, cap)
    return min(cap, _round_up(_cdiv(S, n), 8))


def cross_entropy_ensemble_boost(predictions, labels, *,
                                 label_smoothing: float = 0.0,
                                 boost_smoothing: float = 0.2,
                                 seq_tile=None,
                                 vmem_budget_bytes=None,
                                 vmem_limit_bytes=None):
    """predictions: (E, S, V); labels: (S,) int ids or (S, V) float dists."""
    E, S, V = predictions.shape
    out_dtype = predictions.dtype
    int_labels = bool(jnp.issubdtype(labels.dtype, jnp.integer))
    fast_path = int_labels and float(label_smoothing) == 0.0

    logit_bytes = jnp.dtype(predictions.dtype).itemsize

    # Generation-aware VMEM budgeting (v7x: 64 MiB, 2 TCs; v5e/v6e: 128 MiB).
    try:
        vmem_cap = int(getattr(pltpu.get_tpu_info(), "vmem_capacity_bytes",
                               64 << 20))
    except Exception:
        vmem_cap = 64 << 20
    small_vmem = vmem_cap <= (64 << 20)
    if vmem_budget_bytes is None:
        vmem_budget_bytes = (26 << 20) if small_vmem else (56 << 20)
    if vmem_limit_bytes is None:
        vmem_limit_bytes = (44 << 20) if small_vmem else (100 << 20)

    # Bytes per sequence row: double-buffered logits + ~16 B/elem of f32
    # elementwise/reduction temporaries, plus path-specific scratch / streams.
    temp_bytes = 16
    per_row = V * (2 * logit_bytes + temp_bytes) + 64
    if not fast_path:
        per_row += V * 8                           # (ts,V) weights + label cache
        if not int_labels:
            per_row += V * 2 * jnp.dtype(labels.dtype).itemsize
    ts = int(seq_tile) if seq_tile is not None else _pick_seq_tile(
        S, per_row, vmem_budget_bytes, want_multi_tile=small_vmem)
    n_tiles = _cdiv(S, ts)
    row_mask = (S % ts) != 0   # ragged last tile masked in-kernel (no jnp.pad copy)

    if int_labels:
        label_arg = labels.astype(jnp.int32).reshape(S, 1)
        label_spec = pl.BlockSpec((ts, 1), lambda i, e: (i, 0))
    else:
        label_arg = labels                         # native dtype; smoothed in-kernel
        label_spec = pl.BlockSpec((ts, V), lambda i, e: (i, 0))

    if fast_path:
        kernel = functools.partial(
            _ceb_fast_kernel, n_members=E, boost=float(boost_smoothing),
            seq_len=S, row_mask=row_mask)
        scratch = [pltpu.VMEM((ts, 1), jnp.float32),   # boosted weight @ label col
                   pltpu.VMEM((ts, 1), jnp.float32)]   # per-row loss accumulator
    else:
        kernel = functools.partial(
            _ceb_dense_kernel, n_members=E, boost=float(boost_smoothing),
            smoothing=float(label_smoothing), int_labels=int_labels,
            seq_len=S, row_mask=row_mask)
        scratch = [pltpu.VMEM((ts, V), jnp.float32),   # running boosted weights
                   pltpu.VMEM((ts, V), jnp.float32),   # cached smoothed labels
                   pltpu.VMEM((ts, 1), jnp.float32)]   # per-row loss accumulator

    # TODO(synk): for extreme V (>~512K on v7x / ~1M on v6e) add an inner
    # V-tile axis with an online (running max/lse) log-softmax.
    # TODO(synk): on v5e, if xprof shows exposed DMA at S-tile boundaries, try
    # pipeline_mode=pl.Buffered(3) on the logits BlockSpec.
    partials = pl.pallas_call(
        kernel,
        out_shape=jax.ShapeDtypeStruct((n_tiles, 8, 128), jnp.float32),
        grid_spec=pltpu.PrefetchScalarGridSpec(
            num_scalar_prefetch=0,
            grid=(n_tiles, E),                     # S-tiles outer, ensemble inner
            in_specs=[
                label_spec,
                pl.BlockSpec((1, ts, V), lambda i, e: (e, i, 0)),
            ],
            out_specs=pl.BlockSpec((1, 8, 128), lambda i, e: (i, 0, 0)),
            scratch_shapes=scratch,
        ),
        compiler_params=pltpu.CompilerParams(
            dimension_semantics=("parallel", "arbitrary"),
            vmem_limit_bytes=int(vmem_limit_bytes),
        ),
    )(label_arg, predictions)

    loss = jnp.sum(partials[:, 0, 0]) * (1.0 / V)   # accumulate/scale in float32
    return loss.reshape(1).astype(out_dtype)


def _reference(predictions, labels, *, label_smoothing=0.0, boost_smoothing=0.2):
    E, S, V = predictions.shape
    if jnp.issubdtype(labels.dtype, jnp.integer):
        labels = jax.nn.one_hot(labels, V, dtype=jnp.float32)
    labels = (1.0 - label_smoothing) * labels.astype(jnp.float32) + label_smoothing / V
    weights = jnp.ones((S, V), jnp.float32)
    loss = jnp.zeros((1,), jnp.float32)
    for e in range(E):
        logit = predictions[e].astype(jnp.float32)
        entropy = -labels * jax.nn.log_softmax(logit, axis=-1)
        w_ent = weights * entropy
        loss = loss + w_ent.sum() / V
        weights = w_ent * (1.0 - boost_smoothing) + boost_smoothing
    return loss.astype(predictions.dtype)


if __name__ == "__main__":
    key = jax.random.PRNGKey(0)
    k1, k2, k3, k4, k5, k6, k7 = jax.random.split(key, 7)

    # 1) int labels, no smoothing -> fast path, single tile
    E, S, V = 3, 8, 128
    preds = jax.random.normal(k1, (E, S, V), dtype=jnp.float32)
    labels = jax.random.randint(k2, (S,), 0, V, dtype=jnp.int32)
    out = jax.block_until_ready(cross_entropy_ensemble_boost(preds, labels))
    ref = _reference(preds, labels)
    assert out.shape == (1,)
    assert jnp.allclose(out, ref, rtol=1e-5, atol=1e-5), (out, ref)

    # 2) int labels + smoothing, S not a multiple of the tile
    #    (dense-int path; exercises in-kernel ragged-row masking, no host pad)
    E2, S2, V2 = 2, 20, 256
    preds2 = jax.random.normal(k3, (E2, S2, V2), dtype=jnp.float32)
    labels2 = jax.random.randint(k4, (S2,), 0, V2, dtype=jnp.int32)
    out2 = jax.block_until_ready(
        cross_entropy_ensemble_boost(preds2, labels2, label_smoothing=0.1,
                                     seq_tile=8))
    ref2 = _reference(preds2, labels2, label_smoothing=0.1)
    assert jnp.allclose(out2, ref2, rtol=1e-5, atol=1e-5), (out2, ref2)

    # 3) dense float label distributions (smoothing folded into the kernel)
    E3, S3, V3 = 2, 16, 256
    preds3 = jax.random.normal(k5, (E3, S3, V3), dtype=jnp.float32)
    lab3 = jax.nn.softmax(
        jax.random.normal(jax.random.PRNGKey(7), (S3, V3), dtype=jnp.float32), -1)
    out3 = jax.block_until_ready(
        cross_entropy_ensemble_boost(preds3, lab3, label_smoothing=0.05))
    ref3 = _reference(preds3, lab3, label_smoothing=0.05)
    assert jnp.allclose(out3, ref3, rtol=1e-5, atol=1e-5), (out3, ref3)

    # 4) fast path with a ragged last tile (int labels, no smoothing, S % ts != 0)
    E4, S4, V4 = 3, 20, 128
    preds4 = jax.random.normal(k6, (E4, S4, V4), dtype=jnp.float32)
    labels4 = jax.random.randint(k7, (S4,), 0, V4, dtype=jnp.int32)
    out4 = jax.block_until_ready(
        cross_entropy_ensemble_boost(preds4, labels4, seq_tile=8))
    ref4 = _reference(preds4, labels4)
    assert jnp.allclose(out4, ref4, rtol=1e-5, atol=1e-5), (out4, ref4)

    print("KERNEL_OK")
</pallas_src>

<mosaic_0001>
module attributes {stable_mosaic.version = 11 : i64} {
  func.func @_ceb_fast_kernel(%arg0: i32, %arg1: i32, %arg2: memref<8x1xi32, #tpu.memory_space<vmem>>, %arg3: memref<1x8x128xf32, #tpu.memory_space<vmem>>, %arg4: memref<1x8x128xf32, #tpu.memory_space<vmem>>, %arg5: memref<8x1xf32, #tpu.memory_space<vmem>>, %arg6: memref<8x1xf32, #tpu.memory_space<vmem>>) attributes {dimension_semantics = [#tpu.dimension_semantics<parallel>, #tpu.dimension_semantics<arbitrary>], iteration_bounds = array<i64: 1, 3>, scalar_prefetch = 0 : i64, scratch_operands = 2 : i64, tpu.core_type = #tpu.core_type<tc>, window_params = [{transform_indices = @transform_0, window_bounds = array<i64: 8, 1>}, {transform_indices = @transform_1, window_bounds = array<i64: 1, 8, 128>}, {transform_indices = @transform_2, window_bounds = array<i64: 1, 8, 128>}]} {
    %c0 = arith.constant 0 : index
    %c0_0 = arith.constant 0 : index
    %c0_1 = arith.constant 0 : index
    %0 = vector.load %arg3[%c0, %c0_0, %c0_1] : memref<1x8x128xf32, #tpu.memory_space<vmem>>, vector<1x8x128xf32>
    %1 = vector.shape_cast %0 : vector<1x8x128xf32> to vector<8x128xf32>
    %cst = arith.constant dense<0xFF800000> : vector<8xf32>
    %2 = vector.multi_reduction <maximumf>, %1, %cst [1] : vector<8x128xf32> to vector<8xf32>
    %3 = vector.shape_cast %2 : vector<8xf32> to vector<8x1xf32>
    %4 = vector.broadcast %3 : vector<8x1xf32> to vector<8x128xf32>
    %5 = arith.subf %1, %4 : vector<8x128xf32>
    %6 = math.exp %5 : vector<8x128xf32>
    %cst_2 = arith.constant dense<0.000000e+00> : vector<8xf32>
    %7 = vector.multi_reduction <add>, %6, %cst_2 [1] : vector<8x128xf32> to vector<8xf32>
    %8 = vector.shape_cast %7 : vector<8xf32> to vector<8x1xf32>
    %9 = math.log %8 : vector<8x1xf32>
    %c0_3 = arith.constant 0 : index
    %c0_4 = arith.constant 0 : index
    %10 = vector.load %arg2[%c0_3, %c0_4] : memref<8x1xi32, #tpu.memory_space<vmem>>, vector<8x1xi32>
    %11 = tpu.iota {dimensions = array<i32: 1>} : vector<8x128xi32>
    %12 = vector.broadcast %10 : vector<8x1xi32> to vector<8x128xi32>
    %13 = arith.cmpi eq, %11, %12 : vector<8x128xi32>
    %cst_5 = arith.constant 0.000000e+00 : f32
    %14 = vector.broadcast %cst_5 : f32 to vector<8x128xf32>
    %15 = arith.select %13, %5, %14 : vector<8x128xi1>, vector<8x128xf32>
    %cst_6 = arith.constant dense<0.000000e+00> : vector<8xf32>
    %16 = vector.multi_reduction <add>, %15, %cst_6 [1] : vector<8x128xf32> to vector<8xf32>
    %17 = vector.shape_cast %16 : vector<8xf32> to vector<8x1xf32>
    %18 = arith.subf %9, %17 : vector<8x1xf32>
    %c0_i32 = arith.constant 0 : i32
    %19 = arith.cmpi eq, %arg1, %c0_i32 : i32
    %20 = arith.extui %19 : i1 to i32
    %c0_i32_7 = arith.constant 0 : i32
    %21 = arith.cmpi ne, %20, %c0_i32_7 : i32
    scf.if %21 {
      %c0_11 = arith.constant 0 : index
      %c0_12 = arith.constant 0 : index
      %28 = vector.load %arg6[%c0_11, %c0_12] : memref<8x1xf32, #tpu.memory_space<vmem>>, vector<8x1xf32>
      tpu.vector_store %arg6[%c0_11, %c0_12], %18 {strides = array<i32>} : memref<8x1xf32, #tpu.memory_space<vmem>>, vector<8x1xf32>,
      %cst_13 = arith.constant 8.000000e-01 : f32
      %29 = vector.broadcast %cst_13 : f32 to vector<8x1xf32>
      %30 = arith.mulf %18, %29 : vector<8x1xf32>
      %cst_14 = arith.constant 2.000000e-01 : f32
      %31 = vector.broadcast %cst_14 : f32 to vector<8x1xf32>
      %32 = arith.addf %30, %31 : vector<8x1xf32>
      %c0_15 = arith.constant 0 : index
      %c0_16 = arith.constant 0 : index
      %33 = vector.load %arg5[%c0_15, %c0_16] : memref<8x1xf32, #tpu.memory_space<vmem>>, vector<8x1xf32>
      tpu.vector_store %arg5[%c0_15, %c0_16], %32 {strides = array<i32>} : memref<8x1xf32, #tpu.memory_space<vmem>>, vector<8x1xf32>,
    } else {
    }
    %c0_i32_8 = arith.constant 0 : i32
    %22 = arith.cmpi sgt, %arg1, %c0_i32_8 : i32
    %23 = arith.extui %22 : i1 to i32
    %c0_i32_9 = arith.constant 0 : i32
    %24 = arith.cmpi ne, %23, %c0_i32_9 : i32
    scf.if %24 {
      %c0_11 = arith.constant 0 : index
      %c0_12 = arith.constant 0 : index
      %28 = vector.load %arg5[%c0_11, %c0_12] : memref<8x1xf32, #tpu.memory_space<vmem>>, vector<8x1xf32>
      %29 = arith.mulf %28, %18 : vector<8x1xf32>
      %c0_13 = arith.constant 0 : index
      %c0_14 = arith.constant 0 : index
      %30 = vector.load %arg6[%c0_13, %c0_14] : memref<8x1xf32, #tpu.memory_space<vmem>>, vector<8x1xf32>
      %31 = arith.addf %30, %29 : vector<8x1xf32>
      %c0_15 = arith.constant 0 : index
      %c0_16 = arith.constant 0 : index
      %32 = vector.load %arg6[%c0_15, %c0_16] : memref<8x1xf32, #tpu.memory_space<vmem>>, vector<8x1xf32>
      tpu.vector_store %arg6[%c0_15, %c0_16], %31 {strides = array<i32>} : memref<8x1xf32, #tpu.memory_space<vmem>>, vector<8x1xf32>,
      %c2_i32_17 = arith.constant 2 : i32
      %33 = arith.cmpi slt, %arg1, %c2_i32_17 : i32
      %34 = arith.extui %33 : i1 to i32
      %c0_i32_18 = arith.constant 0 : i32
      %35 = arith.cmpi ne, %34, %c0_i32_18 : i32
      scf.if %35 {
        %cst_19 = arith.constant 8.000000e-01 : f32
        %36 = vector.broadcast %cst_19 : f32 to vector<8x1xf32>
        %37 = arith.mulf %29, %36 : vector<8x1xf32>
        %cst_20 = arith.constant 2.000000e-01 : f32
        %38 = vector.broadcast %cst_20 : f32 to vector<8x1xf32>
        %39 = arith.addf %37, %38 : vector<8x1xf32>
        %c0_21 = arith.constant 0 : index
        %c0_22 = arith.constant 0 : index
        %40 = vector.load %arg5[%c0_21, %c0_22] : memref<8x1xf32, #tpu.memory_space<vmem>>, vector<8x1xf32>
        tpu.vector_store %arg5[%c0_21, %c0_22], %39 {strides = array<i32>} : memref<8x1xf32, #tpu.memory_space<vmem>>, vector<8x1xf32>,
      } else {
      }
    } else {
    }
    %c2_i32 = arith.constant 2 : i32
    %25 = arith.cmpi eq, %arg1, %c2_i32 : i32
    %26 = arith.extui %25 : i1 to i32
    %c0_i32_10 = arith.constant 0 : i32
    %27 = arith.cmpi ne, %26, %c0_i32_10 : i32
    scf.if %27 {
      %c0_11 = arith.constant 0 : index
      %c0_12 = arith.constant 0 : index
      %28 = vector.load %arg6[%c0_11, %c0_12] : memref<8x1xf32, #tpu.memory_space<vmem>>, vector<8x1xf32>
      %29 = vector.shape_cast %28 : vector<8x1xf32> to vector<1x8x1xf32>
      %cst_13 = arith.constant dense<0.000000e+00> : vector<1xf32>
      %30 = vector.multi_reduction <add>, %29, %cst_13 [1, 2] : vector<1x8x1xf32> to vector<1xf32>
      %31 = vector.shape_cast %30 : vector<1xf32> to vector<1x1x1xf32>
      %32 = vector.extract %31[0, 0, 0] : f32 from vector<1x1x1xf32>
      %cst_14 = arith.constant 0.000000e+00 : f32
      %33 = vector.broadcast %cst_14 : f32 to vector<1x8x128xf32>
      %34 = vector.broadcast %32 : f32 to vector<1x8x128xf32>
      %35 = arith.addf %33, %34 : vector<1x8x128xf32>
      %c0_15 = arith.constant 0 : index
      %c0_16 = arith.constant 0 : index
      %c0_17 = arith.constant 0 : index
      %36 = vector.load %arg4[%c0_15, %c0_16, %c0_17] : memref<1x8x128xf32, #tpu.memory_space<vmem>>, vector<1x8x128xf32>
      tpu.vector_store %arg4[%c0_15, %c0_16, %c0_17], %35 {strides = array<i32>} : memref<1x8x128xf32, #tpu.memory_space<vmem>>, vector<1x8x128xf32>,
    } else {
    }
    return
  }
  func.func @transform_0(%arg0: i32, %arg1: i32) -> (i32, i32) {
    %c0_i32 = arith.constant 0 : i32
    %c0_i32_0 = arith.constant 0 : i32
    return %arg0, %c0_i32 : i32, i32
  }
  func.func @transform_1(%arg0: i32, %arg1: i32) -> (i32, i32, i32) {
    %c0_i32 = arith.constant 0 : i32
    %c0_i32_0 = arith.constant 0 : i32
    return %arg1, %arg0, %c0_i32 : i32, i32, i32
  }
  func.func @transform_2(%arg0: i32, %arg1: i32) -> (i32, i32, i32) {
    %c0_i32 = arith.constant 0 : i32
    %c0_i32_0 = arith.constant 0 : i32
    %c0_i32_1 = arith.constant 0 : i32
    return %arg0, %c0_i32, %c0_i32_0 : i32, i32, i32
  }
}

</mosaic_0001>

<llo_original>
// kernel: tpu_custom_call.1
$region0: #{tpu_custom_call.1}
  #allocation0 [shape = 'u32[]', space=smem, size = 0x4, offset = 0x4, fixed_abs, tag = 'smem constant byte address 0x4 - core index']
  #allocation1 [shape = 'u32[144,128]{1,0:T(1,128)}', space=vmem, size = 0x12000, scoped, tag = 'internal scratch']
  #allocation2 [shape = 'f32[8,1]{1,0:T(8,128)}', space=vmem, size = 0x1000, scoped, tag = 'scratch operand']
  #allocation3 [shape = 'f32[8,1]{1,0:T(8,128)}', space=vmem, size = 0x1000, scoped, tag = 'scratch operand']
  %s0 = inlined_call_operand.vmem [shape: s32[8,1], index: 0, kind: input, shape index: {}]
  %s1 = inlined_call_operand.hbm [shape: f32[3,8,128], index: 1, kind: input, shape index: {}]
  %s2 = inlined_call_operand.hbm [shape: f32[1,8,128], index: 2, kind: output, shape index: {}]
  %s3 = sld [smem:[#allocation0]]
  $region61: #{tpu_custom_call.1} parent=0
    _
  %s5 = ssub.s32 1, %s3
  %s6 = scalar_select 0, %s5, %s3
  $region1: #{tpu_custom_call.1} parent=0
    #allocation4 [shape = 'u8[8192]{0}', space=vmem, size = 0x2000, scoped, tag = 'input window, operand 1']
    #allocation5 [shape = 's32[2]{0}', space=sflag, size = 0x8, scoped, tag = 'scoped memory for tpu_custom_call.1']
    #allocation6 [shape = 's32[2]{0}', space=sflag, size = 0x8, scoped, tag = 'scoped memory for tpu_custom_call.1']
    #allocation7 [shape = 'u8[4096]{0}', space=vmem, size = 0x1000, scoped, tag = 'output window, operand 0, single buffered']
    %7 = vsyncpa [#allocation5], 0
    %s8 = scalar_lea.sflag [#allocation5], 1
    %9 = vsyncpa %s8, 0
    %10 = vsyncpa [#allocation6], 0
    loop: start=0, step=1, limit=5
    $region2: #{tpu_custom_call.1} parent=1 // loop_pre_header
      _
    $region3: #{tpu_custom_call.1} parent=1 // loop_header
      %s12 = sphi 0, %s16
      %p13 = scmp.ge.s32.totalorder %s12, 5
      %s19 = sphi 0, %s31
      %s20 = sphi 0, %s27
      %s21 = sphi 0, %s19
      %s22 = sphi 0, %s20
      %s23 = sphi 0, %s21
      %s24 = sphi 0, %s22
      %s34 = sphi 0, %s36
      %s37 = sphi 0, %s34
      %s38 = sphi 0, %s37
      %s54 = sphi 0, %s38
      %s62 = sphi 0, %s64
      %s65 = sphi 0, %s62
      %s66 = sphi 0, %s65
      %s82 = sphi 0, %s66
      %s88 = sphi 0, %s90
      %s91 = sphi 0, %s88
      %s92 = sphi 0, %s91
      %s108 = sphi 0, %s92
    $region4: #{tpu_custom_call.1} parent=1 // loop_header_branch
      %15 = sbr.rel (%p13) target = $region8
    $region5: #{tpu_custom_call.1} parent=1 // loop_body
      %s17 = ssub.s32 %s12, 1
      %s18 = ssub.s32 %s12, 2
      %s25 = sadd.s32 1, %s20
      %p26 = scmp.ge.s32.totalorder %s25, 3
      %s27 = scalar_select %p26, 0, %s25
      %s28 = sadd.s32 1, %s19
      %s29 = scalar_select %p26, %s28, %s19
      %p30 = scmp.ge.s32.totalorder %s29, 1
      %s31 = scalar_select %p30, 0, %s29
      %s32 = ssub.s32 %s19, %s31
      %p33 = scmp.eq.s32.totalorder %s32, 0
      %s35 = sadd.s32 %s34, 1
      %s36 = scalar_select %p33, %s34, %s35
      %p39 = pneg %p33
      %p40 = scmp.eq.s32.totalorder %s12, 2
      %p41 = por %p39, %p40
      %p42 = scmp.ne.s32.totalorder %s34, %s37
      %p43 = scmp.eq.s32.totalorder %s12, 0
      %p44 = por %p42, %p43
      %p45 = scmp.ne.s32.totalorder %s34, %s37
      %p46 = scmp.eq.s32.totalorder %s17, 2
      %p47 = por %p45, %p46
      %p48 = scmp.ne.s32.totalorder %s37, %s38
      %p49 = scmp.eq.s32.totalorder %s17, 0
      %p50 = por %p48, %p49
      %p51 = scmp.ne.s32.totalorder %s37, %s38
      %p52 = scmp.eq.s32.totalorder %s18, 2
      %p53 = por %p51, %p52
      %p55 = scmp.ne.s32.totalorder %s38, %s54
      %p56 = scmp.eq.s32.totalorder %s18, 0
      %p57 = por %p55, %p56
      %s58 = ssub.s32 %s20, %s27
      %s59 = ssub.s32 %s19, %s31
      %s60 = sor.u32 %s58, %s59
      %p61 = scmp.eq.s32.totalorder %s60, 0
      %s63 = sadd.s32 %s62, 1
      %s64 = scalar_select %p61, %s62, %s63
      %p67 = pneg %p61
      %p68 = scmp.eq.s32.totalorder %s12, 2
      %p69 = por %p67, %p68
      %p70 = scmp.ne.s32.totalorder %s62, %s65
      %p71 = scmp.eq.s32.totalorder %s12, 0
      %p72 = por %p70, %p71
      %p73 = scmp.ne.s32.totalorder %s62, %s65
      %p74 = scmp.eq.s32.totalorder %s17, 2
      %p75 = por %p73, %p74
      %p76 = scmp.ne.s32.totalorder %s65, %s66
      %p77 = scmp.eq.s32.totalorder %s17, 0
      %p78 = por %p76, %p77
      %p79 = scmp.ne.s32.totalorder %s65, %s66
      %p80 = scmp.eq.s32.totalorder %s18, 2
      %p81 = por %p79, %p80
      %p83 = scmp.ne.s32.totalorder %s66, %s82
      %p84 = scmp.eq.s32.totalorder %s18, 0
      %p85 = por %p83, %p84
      %s86 = ssub.s32 %s19, %s31
      %p87 = scmp.eq.s32.totalorder %s86, 0
      %s89 = sadd.s32 %s88, 1
      %s90 = scalar_select %p87, %s88, %s89
      %p93 = pneg %p87
      %p94 = scmp.eq.s32.totalorder %s12, 2
      %p95 = por %p93, %p94
      %p96 = scmp.ne.s32.totalorder %s88, %s91
      %p97 = scmp.eq.s32.totalorder %s12, 0
      %p98 = por %p96, %p97
      %p99 = scmp.ne.s32.totalorder %s88, %s91
      %p100 = scmp.eq.s32.totalorder %s17, 2
      %p101 = por %p99, %p100
      %p102 = scmp.ne.s32.totalorder %s91, %s92
      %p103 = scmp.eq.s32.totalorder %s17, 0
      %p104 = por %p102, %p103
      %p105 = scmp.ne.s32.totalorder %s91, %s92
      %p106 = scmp.eq.s32.totalorder %s18, 2
      %p107 = por %p105, %p106
      %p109 = scmp.ne.s32.totalorder %s92, %s108
      %p110 = scmp.eq.s32.totalorder %s18, 0
      %p111 = por %p109, %p110
      %p112 = scmp.le.s32.totalorder 1, %s12
      %p113 = scmp.lt.s32.totalorder %s12, 4
      %p114 = pnand %p112, %p113
      %p115 = pneg %p114
      // Predicated region
      $region9: #{tpu_custom_call.1} parent=5 // pred_check
        _
      $region10: #{tpu_custom_call.1} parent=5 // pred_check_branch
        %117 = sbr.rel (%p114) target = $region12
      $region11: #{tpu_custom_call.1} parent=5 // pred_region
        %s118 = ssub.s32 %s12, 1
        // Predicated region
        $region13: #{tpu_custom_call.1} parent=11 // pred_check
          %p119 = pneg %p50
        $region14: #{tpu_custom_call.1} parent=11 // pred_check_branch
          %121 = sbr.rel (%p119) target = $region16
        $region15: #{tpu_custom_call.1} parent=11 // pred_region
          %p122 = scmp.lt.s32.totalorder %s21, 0
          %s123 = scalar_select %p122, %s21, 0
          %s124 = smul.addr %s123, 8
          %s125 = scalar_lea.vmem %s0, %s124
        $region16: #{tpu_custom_call.1} parent=11 // pred_fallthru
          _
      $region12: #{tpu_custom_call.1} parent=5 // pred_fallthru
        _
      %p126 = scmp.lt.s32.totalorder %s12, 3
      // Predicated region
      $region17: #{tpu_custom_call.1} parent=5 // pred_check
        %p127 = pneg %p126
      $region18: #{tpu_custom_call.1} parent=5 // pred_check_branch
        %129 = sbr.rel (%p127) target = $region20
      $region19: #{tpu_custom_call.1} parent=5 // pred_region
        // Predicated region
        $region21: #{tpu_custom_call.1} parent=19 // pred_check
          %p130 = pneg %p72
        $region22: #{tpu_custom_call.1} parent=19 // pred_check_branch
          %132 = sbr.rel (%p130) target = $region24
        $region23: #{tpu_custom_call.1} parent=19 // pred_region
          %s133 = sand.u32 %s62, 1
          %s134 = scalar_lea.sflag [#allocation5], %s133
          %s135 = sand.u32 %s62, 1
          %s136 = smul.addr %s135, 8
          %s137 = scalar_lea.vmem [#allocation4], %s136
          %s139 = ssub.s32 128, 128
          %140 = vsyncadd %s134, %s139
          %s141 = sadd.s32 %s19, %s20
          %s142 = smul.addr %s141, 128
          %s143 = scalar_lea.hbm %s1, %s142
          %s145 = sshll.u32 %s137, 4
          %s146 = int_to_ptr.vmem [resolvable:$true] %s145
          %148 = dma.hbm_to_vmem [thread:$0]  %s143, 128, %s146, %s134
        $region24: #{tpu_custom_call.1} parent=19 // pred_fallthru
          _
      $region20: #{tpu_custom_call.1} parent=5 // pred_fallthru
        _
      %p149 = scmp.le.s32.totalorder 1, %s12
      %p150 = scmp.lt.s32.totalorder %s12, 4
      %p151 = pnand %p149, %p150
      %p152 = pneg %p151
      // Predicated region
      $region25: #{tpu_custom_call.1} parent=5 // pred_check
        _
      $region26: #{tpu_custom_call.1} parent=5 // pred_check_branch
        %154 = sbr.rel (%p151) target = $region28
      $region27: #{tpu_custom_call.1} parent=5 // pred_region
        %s155 = ssub.s32 %s12, 1
        %s156 = sand.u32 %s65, 1
        %s157 = scalar_lea.sflag [#allocation5], %s156
        %s158 = sand.u32 %s65, 1
        %s159 = smul.addr %s158, 8
        %s160 = scalar_lea.vmem [#allocation4], %s159
        // Predicated region
        $region29: #{tpu_custom_call.1} parent=27 // pred_check
          %p161 = pneg %p78
        $region30: #{tpu_custom_call.1} parent=27 // pred_check_branch
          %163 = sbr.rel (%p161) target = $region32
        $region31: #{tpu_custom_call.1} parent=27 // pred_region
          %164 = dma.done %s157, 128
        $region32: #{tpu_custom_call.1} parent=27 // pred_fallthru
          _
        %p165 = scmp.lt.s32.totalorder %s21, 0
        %s166 = scalar_select %p165, %s21, 0
        %s167 = smul.addr %s166, 8
        %s168 = scalar_lea.vmem %s0, %s167
        %p169 = pneg %p50
        %p170 = pneg %p47
        %s171 = sand.u32 %s65, 1
        %s172 = scalar_lea.sflag [#allocation5], %s171
        %s173 = sand.u32 %s65, 1
        %s174 = smul.addr %s173, 8
        %s175 = scalar_lea.vmem [#allocation4], %s174
        %p176 = pneg %p78
        %p177 = pneg %p75
        %p178 = pneg %p104
        %p179 = pneg %p101
        %p180 = scmp.lt.s32.totalorder %s21, 0
        %s181 = scalar_select %p180, %s21, 0
        %s182 = smul.addr %s181, 8
        %s183 = scalar_lea.vmem %s0, %s182
        %v184 = vld [vmem:[%s160] sm:$0xff]
        %185 = vmax.xlane.f32.xlu0 %v184
        %v186 = vpop.xlane.xlu0 %185
        %v187 = vsub.f32 %v184, %v186
        %v188 = vmul.f32 %v187, 1.442695
        %v189 = vpow.pop %v188
        %190 = vadd.xlane.f32.xlu0 %v189
        %v191 = vpop.xlane.xlu0 %190
        %v192 = vlog2.pop %v191
        %v193 = vmul.f32 %v192, 0.6931472
        %v194 = vld [vmem:[%s183] sm:$0xff]
        %v195 = vlaneseq
        %v196 = vand.u32 %v195, 127
        %197 = vset.pattern.permute.xlu0 0
        %198 = vperm.xlu0 %197, %v194
        %v199 = vpop.permute.xlu0 %198
        %vm200 = vcmp.eq.s32.totalorder %v196, %v199
        %v201 = vsel %vm200, %v187, 0.0
        %202 = vadd.xlane.f32.xlu0 %v201
        %v203 = vpop.xlane.xlu0 %202
        %v204 = vsub.f32 %v193, %v203
        %p205 = scmp.eq.s32.totalorder %s22, 0
        // Predicated region
        $region33: #{tpu_custom_call.1} parent=27 // pred_check
          %p206 = pneg %p205
        $region34: #{tpu_custom_call.1} parent=27 // pred_check_branch
          %208 = sbr.rel (%p206) target = $region36
        $region35: #{tpu_custom_call.1} parent=27 // pred_region
          %vm209 = vcmask 7168
          %210 = vst.msk [vmem:[#allocation3] sm:$0xff] %vm209, %v204
          %v211 = vmul.f32 %v204, 0.8
          %v212 = vadd.f32 %v211, 0.2
          %213 = vst.msk [vmem:[#allocation2] sm:$0xff] %vm209, %v212
        $region36: #{tpu_custom_call.1} parent=27 // pred_fallthru
          _
        %p214 = scmp.gt.s32.totalorder %s22, 0
        // Predicated region
        $region37: #{tpu_custom_call.1} parent=27 // pred_check
          %p215 = pneg %p214
        $region38: #{tpu_custom_call.1} parent=27 // pred_check_branch
          %217 = sbr.rel (%p215) target = $region40
        $region39: #{tpu_custom_call.1} parent=27 // pred_region
          %v218 = vld [vmem:[#allocation2] sm:$0xff]
          %v219 = vmul.f32 %v218, %v204
          %v220 = vld [vmem:[#allocation3] sm:$0xff]
          %v221 = vadd.f32 %v220, %v219
          %vm222 = vcmask 7168
          %223 = vst.msk [vmem:[#allocation3] sm:$0xff] %vm222, %v221
          %p224 = scmp.lt.s32.totalorder %s22, 2
          // Predicated region
          $region41: #{tpu_custom_call.1} parent=39 // pred_check
            %p225 = pneg %p224
          $region42: #{tpu_custom_call.1} parent=39 // pred_check_branch
            %227 = sbr.rel (%p225) target = $region44
          $region43: #{tpu_custom_call.1} parent=39 // pred_region
            %v228 = vmul.f32 %v219, 0.8
            %v229 = vadd.f32 %v228, 0.2
            %230 = vst.msk [vmem:[#allocation2] sm:$0xff] %vm222, %v229
          $region44: #{tpu_custom_call.1} parent=39 // pred_fallthru
            _
        $region40: #{tpu_custom_call.1} parent=27 // pred_fallthru
          _
        %p231 = scmp.eq.s32.totalorder %s22, 2
        // Predicated region
        $region45: #{tpu_custom_call.1} parent=27 // pred_check
          %p232 = pneg %p231
        $region46: #{tpu_custom_call.1} parent=27 // pred_check_branch
          %234 = sbr.rel (%p232) target = $region48
        $region47: #{tpu_custom_call.1} parent=27 // pred_region
          %v235 = vld [vmem:[#allocation3] sm:$0xff]
          %vm236 = vcmask 7168
          %v237 = vsel %vm236, %v235, 0.0
          %238 = vadd.xlane.f32.xlu0 %v237
          %v239 = vpop.xlane.xlu0 %238
          %v240 = vrot.slane %v239, 4
          %v241 = vadd.f32 %v239, %v240
          %v242 = vrot.slane %v241, 2
          %v243 = vadd.f32 %v241, %v242
          %v244 = vrot.slane %v243, 1
          %v245 = vadd.f32 %v243, %v244
          %s246 = vtos %v245
          %v247 = vstv %s246
          %v248 = vadd.f32 %v247, 0.0
          %249 = vst [vmem:[#allocation7] sm:$0xff] %v248
        $region48: #{tpu_custom_call.1} parent=27 // pred_fallthru
          _
        // Predicated region
        $region49: #{tpu_custom_call.1} parent=27 // pred_check
          %p250 = pneg %p101
        $region50: #{tpu_custom_call.1} parent=27 // pred_check_branch
          %252 = sbr.rel (%p250) target = $region52
        $region51: #{tpu_custom_call.1} parent=27 // pred_region
          %s254 = ssub.s32 128, 128
          %255 = vsyncadd [#allocation6], %s254
          %s256 = smul.addr %s21, 128
          %s257 = scalar_lea.hbm %s2, %s256
          %s259 = sshll.u32 [#allocation7], 4
          %s260 = int_to_ptr.vmem [resolvable:$true] %s259
          %262 = dma.vmem_to_hbm [thread:$0]  %s260, 128, %s257, [#allocation6]
        $region52: #{tpu_custom_call.1} parent=27 // pred_fallthru
          _
        // Predicated region
        $region53: #{tpu_custom_call.1} parent=27 // pred_check
          %p263 = pneg %p101
        $region54: #{tpu_custom_call.1} parent=27 // pred_check_branch
          %265 = sbr.rel (%p263) target = $region56
        $region55: #{tpu_custom_call.1} parent=27 // pred_region
          %266 = dma.done [#allocation6], 128
        $region56: #{tpu_custom_call.1} parent=27 // pred_fallthru
          _
      $region28: #{tpu_custom_call.1} parent=5 // pred_fallthru
        _
      %p267 = scmp.le.s32.totalorder 2, %s12
      // Predicated region
      $region57: #{tpu_custom_call.1} parent=5 // pred_check
        %p268 = pneg %p267
      $region58: #{tpu_custom_call.1} parent=5 // pred_check_branch
        %270 = sbr.rel (%p268) target = $region60
      $region59: #{tpu_custom_call.1} parent=5 // pred_region
        %s271 = ssub.s32 %s12, 2
      $region60: #{tpu_custom_call.1} parent=5 // pred_fallthru
        _
    $region6: #{tpu_custom_call.1} parent=1 // loop_footer
      %s16 = sadd.s32 1, %s12
    $region7: #{tpu_custom_call.1} parent=1 // loop_footer_branch
      %11 = sbr.rel target = $region3
    $region8: #{tpu_custom_call.1} parent=1 // loop_exit
      _
    %272 = vsyncpa [#allocation5], 1
    %s273 = scalar_lea.sflag [#allocation5], 1
    %274 = vsyncpa %s273, 1
    %275 = vsyncpa [#allocation6], 1
    %s276 = scalar_lea.sflag [#allocation6], 1
    %277 = vsyncpa %s276, 1

</llo_original>
